<compile_context>
chip_gen: v5e
topology: v5e:2x2
jax: 0.10.0
libtpu: 0.0.40
codegen_flags: <defaults>
</compile_context>

<pallas_src>
import math

import jax
import jax.numpy as jnp
from jax.experimental import pallas as pl
from jax.experimental.pallas import tpu as pltpu

_LANE = 128


def _round_up(n, m):
    return ((n + m - 1) // m) * m


def _sigmoid(x):
    # sigmoid(x) == 0.5 * tanh(0.5 * x) + 0.5 : one EUP op, no exp + divide.
    return 0.5 * jnp.tanh(0.5 * x) + 0.5


# ---------------------------------------------------------------------------
# Hardware-aware heuristics
# ---------------------------------------------------------------------------
def _vmem_capacity_bytes():
    try:
        cap = getattr(pltpu.get_tpu_info(), "vmem_capacity_bytes", None)
        if cap:
            return int(cap)
    except Exception:
        pass
    return 64 * 2 ** 20  # conservative default: v7x per-TensorCore VMEM


def _tpu_generation():
    try:
        kind = jax.devices()[0].device_kind.lower()
    except Exception:
        return "unknown"
    if "v5" in kind and ("lite" in kind or "5e" in kind):
        return "v5e"
    if "v6" in kind:
        return "v6e"
    if "v7" in kind:
        return "v7x"
    return "unknown"


def _choose_tb(batch, compute_dtype, gen):
    """Batch tile: sublane-aligned for the compute dtype, generation-capped."""
    isz = jnp.dtype(compute_dtype).itemsize
    sub = 8 if isz >= 4 else (16 if isz == 2 else 32)
    # v5e: 128-wide MXU + single vst slot -> 128 rows is enough.
    # v7x (and unknown): 128 keeps >=2 grid programs for B>=256 so the
    # ("parallel",) batch axis can shard across both TensorCores.
    # v6e: plenty of VMEM, larger tiles amortize the ~0.35us per-step overhead.
    cap = {"v5e": 128, "v6e": 512, "v7x": 128}.get(gen, 128)
    return _round_up(min(_round_up(batch, sub), cap), sub)


def _vmem_limit_bytes(vmem_est):
    cap = _vmem_capacity_bytes()
    want = max(int(1.5 * vmem_est) + (8 << 20), 32 << 20)
    return int(max(min(want, cap - (2 << 20)), 16 << 20))


def _resident_spec(shape, single_buffer):
    """BlockSpec for a grid-invariant (VMEM-resident) operand."""
    index_map = lambda *_: (0,) * len(shape)
    if single_buffer:
        return pl.BlockSpec(shape, index_map, pipeline_mode=pl.Buffered(1))
    return pl.BlockSpec(shape, index_map)


# ---------------------------------------------------------------------------
# Parameters
# ---------------------------------------------------------------------------
def init_lstm_cell_params(key, input_size, hidden_size):
    """Deterministic init matching reset_parameters(): U(-std, std), std=1/sqrt(H)."""
    std = 1.0 / math.sqrt(hidden_size)
    k1, k2, k3, k4 = jax.random.split(key, 4)
    uni = lambda k, shape: jax.random.uniform(
        k, shape, dtype=jnp.float32, minval=-std, maxval=std)
    return {
        "x2h_w": uni(k1, (4 * hidden_size, input_size)),
        "x2h_b": uni(k2, (4 * hidden_size,)),
        "h2h_w": uni(k3, (4 * hidden_size, hidden_size)),
        "h2h_b": uni(k4, (4 * hidden_size,)),
    }


def prepare_lstm_params(params, compute_dtype=jnp.float32):
    """One-time parameter prep — call OUTSIDE any recurrent step loop.

    Transposes Wx/Wh to (K, 4H), pads each gate's columns H->Hp (lane
    multiple) so gate slices and hy/cy stores are lane-dense, pads Wh's
    contraction rows H->Hp (zeros, so a zero-padded h state is harmless),
    and folds the two biases once.
    """
    four_h, input_size = params["x2h_w"].shape
    hidden = four_h // 4
    hp = _round_up(hidden, _LANE)

    def pad_gate_cols(w):                       # (rows, 4H) -> (rows, 4Hp)
        if hp == hidden:
            return w
        r = w.shape[0]
        return jnp.pad(w.reshape(r, 4, hidden),
                       ((0, 0), (0, 0), (0, hp - hidden))).reshape(r, 4 * hp)

    wx = pad_gate_cols(params["x2h_w"].T.astype(jnp.float32))       # (I, 4Hp)
    wh = pad_gate_cols(params["h2h_w"].T.astype(jnp.float32))       # (H, 4Hp)
    if hp != hidden:
        wh = jnp.pad(wh, ((0, hp - hidden), (0, 0)))                # (Hp, 4Hp)
    b = (params["x2h_b"] + params["h2h_b"]).astype(jnp.float32)
    b = pad_gate_cols(b.reshape(1, 4 * hidden))                     # (1, 4Hp)

    return {
        "wx": wx.astype(compute_dtype),     # matmul operands (bf16 on v6e/v7x)
        "wh": wh.astype(compute_dtype),
        "b": b,                             # f32, added after f32 accumulation
        "I": input_size,
        "H": hidden,
        "Hp": hp,
        "compute_dtype": jnp.dtype(compute_dtype),
    }


# ---------------------------------------------------------------------------
# Single-step kernel
# ---------------------------------------------------------------------------
def _lstm_cell_kernel(x_ref, hx_ref, cx_ref, wx_ref, wh_ref, b_ref,
                      hy_ref, cy_ref):
    hp = hy_ref.shape[1]
    # Two accumulating MXU dots, f32 accumulation, bias folded once.
    gates = (jnp.dot(x_ref[...], wx_ref[...], preferred_element_type=jnp.float32)
             + jnp.dot(hx_ref[...], wh_ref[...], preferred_element_type=jnp.float32)
             + b_ref[...])
    # chunk(4, dim=1) order: ingate, forgetgate, cellgate, outgate.
    ingate = _sigmoid(gates[:, 0 * hp:1 * hp])
    forgetgate = _sigmoid(gates[:, 1 * hp:2 * hp])
    cellgate = jnp.tanh(gates[:, 2 * hp:3 * hp])
    outgate = _sigmoid(gates[:, 3 * hp:4 * hp])

    cy = cx_ref[...] * forgetgate + ingate * cellgate
    hy = outgate * jnp.tanh(cy)
    cy_ref[...] = cy.astype(cy_ref.dtype)
    hy_ref[...] = hy.astype(hy_ref.dtype)


def lstm_cell_forward(x, hidden, prepared):
    """Pallas LSTMCell forward (single step).

    x: (B, I) f32;  hidden = (hx, cx), each (B, H) f32.
    Returns (hy, cy), each (B, H) f32.
    """
    hx, cx = hidden
    x = x.reshape(-1, x.shape[1])                  # x.view(-1, x.size(1))
    batch, input_size = x.shape
    hidden_size, hp = prepared["H"], prepared["Hp"]
    cd = prepared["compute_dtype"]
    wx, wh, b = prepared["wx"], prepared["wh"], prepared["b"]
    assert input_size == prepared["I"]
    assert hx.shape == (batch, hidden_size) and cx.shape == (batch, hidden_size)

    gen = _tpu_generation()
    tb = _choose_tb(batch, cd, gen)
    bp = _round_up(batch, tb)

    xp = x.astype(cd)
    hxp = hx.astype(cd)
    cxp = cx.astype(jnp.float32)
    if bp != batch:
        xp = jnp.pad(xp, ((0, bp - batch), (0, 0)))
    if bp != batch or hp != hidden_size:
        hxp = jnp.pad(hxp, ((0, bp - batch), (0, hp - hidden_size)))
        cxp = jnp.pad(cxp, ((0, bp - batch), (0, hp - hidden_size)))

    grid = (bp // tb,)
    cd_sz = jnp.dtype(cd).itemsize

    def run(single_buffer):
        wbuf = 1 if single_buffer else 2
        vmem_est = (
            wbuf * (input_size + hp) * 4 * hp * cd_sz        # resident Wx, Wh
            + wbuf * 4 * hp * 4                              # resident bias
            + 2 * tb * (input_size + hp) * cd_sz             # x / hx tiles (x2)
            + 2 * tb * hp * 4                                # cx tiles (x2)
            + 2 * 2 * tb * hp * 4                            # hy / cy tiles (x2)
            + tb * 4 * hp * 4                                # f32 gates temp
            + (tb * (input_size + hp) * 4 if cd_sz < 4 else 0)  # f32 upcasts
        )
        return pl.pallas_call(
            _lstm_cell_kernel,
            out_shape=(jax.ShapeDtypeStruct((bp, hp), jnp.float32),
                       jax.ShapeDtypeStruct((bp, hp), jnp.float32)),
            grid=grid,
            in_specs=[
                pl.BlockSpec((tb, input_size), lambda i: (i, 0)),    # x tile
                pl.BlockSpec((tb, hp), lambda i: (i, 0)),            # hx tile
                pl.BlockSpec((tb, hp), lambda i: (i, 0)),            # cx tile
                _resident_spec((input_size, 4 * hp), single_buffer),  # Wx^T
                _resident_spec((hp, 4 * hp), single_buffer),          # Wh^T
                _resident_spec((1, 4 * hp), single_buffer),           # bias
            ],
            out_specs=(pl.BlockSpec((tb, hp), lambda i: (i, 0)),      # hy
                       pl.BlockSpec((tb, hp), lambda i: (i, 0))),     # cy
            input_output_aliases={2: 1},            # padded cx buffer -> cy
            compiler_params=pltpu.CompilerParams(
                dimension_semantics=("parallel",),
                vmem_limit_bytes=_vmem_limit_bytes(vmem_est)),
        )(xp, hxp, cxp, wx, wh, b)

    try:
        hy, cy = run(True)
    except Exception:
        # Fallback for builds that reject single-buffered resident operands.
        hy, cy = run(False)

    return hy[:batch, :hidden_size], cy[:batch, :hidden_size]


# ---------------------------------------------------------------------------
# Sequence-fused kernel (timestep loop inside the kernel)
# ---------------------------------------------------------------------------
def _lstm_seq_kernel(x_ref, h0_ref, c0_ref, wx_ref, wh_ref, b_ref,
                     hseq_ref, ct_ref, h_scr, c_scr):
    t = pl.program_id(1)
    hp = h_scr.shape[1]

    @pl.when(t == 0)
    def _():
        h_scr[...] = h0_ref[...]
        c_scr[...] = c0_ref[...]

    gates = (jnp.dot(x_ref[...], wx_ref[...], preferred_element_type=jnp.float32)
             + jnp.dot(h_scr[...].astype(wh_ref.dtype), wh_ref[...],
                       preferred_element_type=jnp.float32)
             + b_ref[...])
    ingate = _sigmoid(gates[:, 0 * hp:1 * hp])
    forgetgate = _sigmoid(gates[:, 1 * hp:2 * hp])
    cellgate = jnp.tanh(gates[:, 2 * hp:3 * hp])
    outgate = _sigmoid(gates[:, 3 * hp:4 * hp])

    cy = c_scr[...] * forgetgate + ingate * cellgate
    hy = outgate * jnp.tanh(cy)
    h_scr[...] = hy
    c_scr[...] = cy
    hseq_ref[...] = hy.astype(hseq_ref.dtype)
    # Same block across the t axis; only the final value is written back.
    ct_ref[...] = cy.astype(ct_ref.dtype)


def lstm_sequence_forward(x_seq, hidden, prepared):
    """Whole-sequence LSTM with the timestep loop fused into one kernel.

    x_seq: (T, B, I) f32;  hidden = (h0, c0), each (B, H) f32.
    Returns (h_seq (T, B, H) f32, c_T (B, H) f32).  h_T == h_seq[-1].
    """
    h0, c0 = hidden
    seq_len, batch, input_size = x_seq.shape
    hidden_size, hp = prepared["H"], prepared["Hp"]
    cd = prepared["compute_dtype"]
    wx, wh, b = prepared["wx"], prepared["wh"], prepared["b"]
    assert input_size == prepared["I"]

    gen = _tpu_generation()
    tb = _choose_tb(batch, cd, gen)
    bp = _round_up(batch, tb)

    xs = x_seq.astype(cd)
    h0p = h0.astype(jnp.float32)
    c0p = c0.astype(jnp.float32)
    if bp != batch:
        xs = jnp.pad(xs, ((0, 0), (0, bp - batch), (0, 0)))
    if bp != batch or hp != hidden_size:
        h0p = jnp.pad(h0p, ((0, bp - batch), (0, hp - hidden_size)))
        c0p = jnp.pad(c0p, ((0, bp - batch), (0, hp - hidden_size)))

    grid = (bp // tb, seq_len)
    cd_sz = jnp.dtype(cd).itemsize

    def run(single_buffer):
        wbuf = 1 if single_buffer else 2
        vmem_est = (
            wbuf * (input_size + hp) * 4 * hp * cd_sz        # resident Wx, Wh
            + wbuf * 4 * hp * 4                              # resident bias
            + 2 * tb * input_size * cd_sz                    # x_t tiles (x2)
            + 2 * 2 * tb * hp * 4                            # h0 / c0 tiles
            + 2 * 2 * tb * hp * 4                            # h_seq / c_T tiles
            + 2 * tb * hp * 4                                # h / c scratch
            + tb * 4 * hp * 4                                # f32 gates temp
            + (tb * (input_size + hp) * 4 if cd_sz < 4 else 0)
        )
        return pl.pallas_call(
            _lstm_seq_kernel,
            out_shape=(jax.ShapeDtypeStruct((seq_len, bp, hp), jnp.float32),
                       jax.ShapeDtypeStruct((bp, hp), jnp.float32)),
            grid=grid,
            in_specs=[
                pl.BlockSpec((None, tb, input_size), lambda i, t: (t, i, 0)),
                pl.BlockSpec((tb, hp), lambda i, t: (i, 0)),          # h0
                pl.BlockSpec((tb, hp), lambda i, t: (i, 0)),          # c0
                _resident_spec((input_size, 4 * hp), single_buffer),  # Wx^T
                _resident_spec((hp, 4 * hp), single_buffer),          # Wh^T
                _resident_spec((1, 4 * hp), single_buffer),           # bias
            ],
            out_specs=(
                pl.BlockSpec((None, tb, hp), lambda i, t: (t, i, 0)),  # h_seq
                pl.BlockSpec((tb, hp), lambda i, t: (i, 0)),           # c_T
            ),
            scratch_shapes=[pltpu.VMEM((tb, hp), jnp.float32),
                            pltpu.VMEM((tb, hp), jnp.float32)],
            compiler_params=pltpu.CompilerParams(
                dimension_semantics=("parallel", "arbitrary"),
                vmem_limit_bytes=_vmem_limit_bytes(vmem_est)),
        )(xs, h0p, c0p, wx, wh, b)

    try:
        h_seq, c_t = run(True)
    except Exception:
        h_seq, c_t = run(False)

    return h_seq[:, :batch, :hidden_size], c_t[:batch, :hidden_size]


# ---------------------------------------------------------------------------
# Pure-JAX reference (mirrors the PyTorch forward) and self-test
# ---------------------------------------------------------------------------
def _reference_forward(x, hidden, params):
    hx, cx = hidden
    x = x.reshape(-1, x.shape[1])
    gates = (x @ params["x2h_w"].T + params["x2h_b"]
             + hx @ params["h2h_w"].T + params["h2h_b"])
    i, f, g, o = jnp.split(gates, 4, axis=1)
    i = jax.nn.sigmoid(i)
    f = jax.nn.sigmoid(f)
    g = jnp.tanh(g)
    o = jax.nn.sigmoid(o)
    cy = cx * f + i * g
    hy = o * jnp.tanh(cy)
    return hy, cy


if __name__ == "__main__":
    batch, input_size, hidden_size, seq_len = 8, 16, 32, 6

    key = jax.random.PRNGKey(0)
    kp, kx, kh, kc, ks = jax.random.split(key, 5)

    params = init_lstm_cell_params(kp, input_size, hidden_size)
    x = jax.random.normal(kx, (batch, input_size), dtype=jnp.float32)
    hx = jax.random.normal(kh, (batch, hidden_size), dtype=jnp.float32)
    cx = jax.random.normal(kc, (batch, hidden_size), dtype=jnp.float32)

    hy_want, cy_want = _reference_forward(x, (hx, cx), params)

    # f32 matmul path: must match the reference tightly.
    prep_f32 = prepare_lstm_params(params, compute_dtype=jnp.float32)
    hy, cy = jax.block_until_ready(lstm_cell_forward(x, (hx, cx), prep_f32))
    assert hy.shape == (batch, hidden_size) and cy.shape == (batch, hidden_size)
    assert jnp.allclose(hy, hy_want, atol=1e-5, rtol=1e-5), "hy mismatch (f32)"
    assert jnp.allclose(cy, cy_want, atol=1e-5, rtol=1e-5), "cy mismatch (f32)"

    # bf16 matmul operands (2x MXU + half the weight DMA on v6e/v7x),
    # f32 MXU accumulation; cell state and gate math stay f32.
    prep_bf16 = prepare_lstm_params(params, compute_dtype=jnp.bfloat16)
    hy_b, cy_b = jax.block_until_ready(lstm_cell_forward(x, (hx, cx), prep_bf16))
    assert jnp.allclose(hy_b, hy_want, atol=5e-2, rtol=5e-2), "hy mismatch (bf16)"
    assert jnp.allclose(cy_b, cy_want, atol=5e-2, rtol=5e-2), "cy mismatch (bf16)"

    # Sequence-fused kernel vs. a lax.scan of the reference cell.
    x_seq = jax.random.normal(ks, (seq_len, batch, input_size), dtype=jnp.float32)

    def _scan_step(carry, xt):
        h, c = carry
        h2, c2 = _reference_forward(xt, (h, c), params)
        return (h2, c2), h2

    (h_t_want, c_t_want), h_seq_want = jax.lax.scan(_scan_step, (hx, cx), x_seq)
    h_seq, c_t = jax.block_until_ready(
        lstm_sequence_forward(x_seq, (hx, cx), prep_f32))
    assert h_seq.shape == (seq_len, batch, hidden_size)
    assert jnp.allclose(h_seq, h_seq_want, atol=1e-4, rtol=1e-4), "h_seq mismatch"
    assert jnp.allclose(h_seq[-1], h_t_want, atol=1e-4, rtol=1e-4), "h_T mismatch"
    assert jnp.allclose(c_t, c_t_want, atol=1e-4, rtol=1e-4), "c_T mismatch"

    print("KERNEL_OK")
</pallas_src>

<mosaic_0001>
module attributes {stable_mosaic.version = 11 : i64} {
  func.func @_lstm_cell_kernel(%arg0: i32, %arg1: memref<8x16xf32, #tpu.memory_space<vmem>>, %arg2: memref<8x128xf32, #tpu.memory_space<vmem>>, %arg3: memref<8x128xf32, #tpu.memory_space<vmem>>, %arg4: memref<16x512xf32, #tpu.memory_space<vmem>>, %arg5: memref<128x512xf32, #tpu.memory_space<vmem>>, %arg6: memref<1x512xf32, #tpu.memory_space<vmem>>, %arg7: memref<8x128xf32, #tpu.memory_space<vmem>>, %arg8: memref<8x128xf32, #tpu.memory_space<vmem>>) attributes {dimension_semantics = [#tpu.dimension_semantics<parallel>], iteration_bounds = array<i64: 1>, scalar_prefetch = 0 : i64, scratch_operands = 0 : i64, tpu.core_type = #tpu.core_type<tc>, window_params = [{transform_indices = @transform_0, window_bounds = array<i64: 8, 16>}, {transform_indices = @transform_1, window_bounds = array<i64: 8, 128>}, {transform_indices = @transform_2, window_bounds = array<i64: 8, 128>}, {pipeline_mode = #tpu.pipeline_mode<synchronous>, transform_indices = @transform_3, window_bounds = array<i64: 16, 512>}, {pipeline_mode = #tpu.pipeline_mode<synchronous>, transform_indices = @transform_4, window_bounds = array<i64: 128, 512>}, {pipeline_mode = #tpu.pipeline_mode<synchronous>, transform_indices = @transform_5, window_bounds = array<i64: 1, 512>}, {transform_indices = @transform_6, window_bounds = array<i64: 8, 128>}, {transform_indices = @transform_7, window_bounds = array<i64: 8, 128>}]} {
    %c0 = arith.constant 0 : index
    %c0_0 = arith.constant 0 : index
    %0 = vector.load %arg1[%c0, %c0_0] : memref<8x16xf32, #tpu.memory_space<vmem>>, vector<8x16xf32>
    %c0_1 = arith.constant 0 : index
    %c0_2 = arith.constant 0 : index
    %1 = vector.load %arg4[%c0_1, %c0_2] : memref<16x512xf32, #tpu.memory_space<vmem>>, vector<16x512xf32>
    %cst = arith.constant dense<0.000000e+00> : vector<8x512xf32>
    %2 = tpu.matmul %0, %1, %cst {dimension_numbers = #tpu.dot_dimension_numbers<[1], [0], [0], [1], [0, 0, 1, 1], [], []>} : vector<8x16xf32>, vector<16x512xf32>, vector<8x512xf32> -> vector<8x512xf32>
    %c0_3 = arith.constant 0 : index
    %c0_4 = arith.constant 0 : index
    %3 = vector.load %arg2[%c0_3, %c0_4] : memref<8x128xf32, #tpu.memory_space<vmem>>, vector<8x128xf32>
    %c0_5 = arith.constant 0 : index
    %c0_6 = arith.constant 0 : index
    %4 = vector.load %arg5[%c0_5, %c0_6] : memref<128x512xf32, #tpu.memory_space<vmem>>, vector<128x512xf32>
    %cst_7 = arith.constant dense<0.000000e+00> : vector<8x512xf32>
    %5 = tpu.matmul %3, %4, %cst_7 {dimension_numbers = #tpu.dot_dimension_numbers<[1], [0], [0], [1], [0, 0, 1, 1], [], []>} : vector<8x128xf32>, vector<128x512xf32>, vector<8x512xf32> -> vector<8x512xf32>
    %6 = arith.addf %2, %5 : vector<8x512xf32>
    %c0_8 = arith.constant 0 : index
    %c0_9 = arith.constant 0 : index
    %7 = vector.load %arg6[%c0_8, %c0_9] : memref<1x512xf32, #tpu.memory_space<vmem>>, vector<1x512xf32>
    %8 = vector.broadcast %7 : vector<1x512xf32> to vector<8x512xf32>
    %9 = arith.addf %6, %8 : vector<8x512xf32>
    %10 = vector.extract_strided_slice %9 {offsets = [0, 0], sizes = [8, 128], strides = [1, 1]} : vector<8x512xf32> to vector<8x128xf32>
    %cst_10 = arith.constant 5.000000e-01 : f32
    %11 = vector.broadcast %cst_10 : f32 to vector<8x128xf32>
    %12 = arith.mulf %11, %10 : vector<8x128xf32>
    %13 = math.tanh %12 : vector<8x128xf32>
    %cst_11 = arith.constant 5.000000e-01 : f32
    %14 = vector.broadcast %cst_11 : f32 to vector<8x128xf32>
    %15 = arith.mulf %14, %13 : vector<8x128xf32>
    %cst_12 = arith.constant 5.000000e-01 : f32
    %16 = vector.broadcast %cst_12 : f32 to vector<8x128xf32>
    %17 = arith.addf %15, %16 : vector<8x128xf32>
    %18 = vector.extract_strided_slice %9 {offsets = [0, 128], sizes = [8, 128], strides = [1, 1]} : vector<8x512xf32> to vector<8x128xf32>
    %cst_13 = arith.constant 5.000000e-01 : f32
    %19 = vector.broadcast %cst_13 : f32 to vector<8x128xf32>
    %20 = arith.mulf %19, %18 : vector<8x128xf32>
    %21 = math.tanh %20 : vector<8x128xf32>
    %cst_14 = arith.constant 5.000000e-01 : f32
    %22 = vector.broadcast %cst_14 : f32 to vector<8x128xf32>
    %23 = arith.mulf %22, %21 : vector<8x128xf32>
    %cst_15 = arith.constant 5.000000e-01 : f32
    %24 = vector.broadcast %cst_15 : f32 to vector<8x128xf32>
    %25 = arith.addf %23, %24 : vector<8x128xf32>
    %26 = vector.extract_strided_slice %9 {offsets = [0, 256], sizes = [8, 128], strides = [1, 1]} : vector<8x512xf32> to vector<8x128xf32>
    %27 = math.tanh %26 : vector<8x128xf32>
    %28 = vector.extract_strided_slice %9 {offsets = [0, 384], sizes = [8, 128], strides = [1, 1]} : vector<8x512xf32> to vector<8x128xf32>
    %cst_16 = arith.constant 5.000000e-01 : f32
    %29 = vector.broadcast %cst_16 : f32 to vector<8x128xf32>
    %30 = arith.mulf %29, %28 : vector<8x128xf32>
    %31 = math.tanh %30 : vector<8x128xf32>
    %cst_17 = arith.constant 5.000000e-01 : f32
    %32 = vector.broadcast %cst_17 : f32 to vector<8x128xf32>
    %33 = arith.mulf %32, %31 : vector<8x128xf32>
    %cst_18 = arith.constant 5.000000e-01 : f32
    %34 = vector.broadcast %cst_18 : f32 to vector<8x128xf32>
    %35 = arith.addf %33, %34 : vector<8x128xf32>
    %c0_19 = arith.constant 0 : index
    %c0_20 = arith.constant 0 : index
    %36 = vector.load %arg3[%c0_19, %c0_20] : memref<8x128xf32, #tpu.memory_space<vmem>>, vector<8x128xf32>
    %37 = arith.mulf %36, %25 : vector<8x128xf32>
    %38 = arith.mulf %17, %27 : vector<8x128xf32>
    %39 = arith.addf %37, %38 : vector<8x128xf32>
    %40 = math.tanh %39 : vector<8x128xf32>
    %41 = arith.mulf %35, %40 : vector<8x128xf32>
    %c0_21 = arith.constant 0 : index
    %c0_22 = arith.constant 0 : index
    %42 = vector.load %arg8[%c0_21, %c0_22] : memref<8x128xf32, #tpu.memory_space<vmem>>, vector<8x128xf32>
    tpu.vector_store %arg8[%c0_21, %c0_22], %39 {strides = array<i32>} : memref<8x128xf32, #tpu.memory_space<vmem>>, vector<8x128xf32>,
    %c0_23 = arith.constant 0 : index
    %c0_24 = arith.constant 0 : index
    %43 = vector.load %arg7[%c0_23, %c0_24] : memref<8x128xf32, #tpu.memory_space<vmem>>, vector<8x128xf32>
    tpu.vector_store %arg7[%c0_23, %c0_24], %41 {strides = array<i32>} : memref<8x128xf32, #tpu.memory_space<vmem>>, vector<8x128xf32>,
    return
  }
  func.func @transform_0(%arg0: i32) -> (i32, i32) {
    %c0_i32 = arith.constant 0 : i32
    %c0_i32_0 = arith.constant 0 : i32
    return %arg0, %c0_i32 : i32, i32
  }
  func.func @transform_1(%arg0: i32) -> (i32, i32) {
    %c0_i32 = arith.constant 0 : i32
    %c0_i32_0 = arith.constant 0 : i32
    return %arg0, %c0_i32 : i32, i32
  }
  func.func @transform_2(%arg0: i32) -> (i32, i32) {
    %c0_i32 = arith.constant 0 : i32
    %c0_i32_0 = arith.constant 0 : i32
    return %arg0, %c0_i32 : i32, i32
  }
  func.func @transform_3(%arg0: i32) -> (i32, i32) {
    %c0_i32 = arith.constant 0 : i32
    %c0_i32_0 = arith.constant 0 : i32
    %c0_i32_1 = arith.constant 0 : i32
    return %c0_i32, %c0_i32_0 : i32, i32
  }
  func.func @transform_4(%arg0: i32) -> (i32, i32) {
    %c0_i32 = arith.constant 0 : i32
    %c0_i32_0 = arith.constant 0 : i32
    %c0_i32_1 = arith.constant 0 : i32
    return %c0_i32, %c0_i32_0 : i32, i32
  }
  func.func @transform_5(%arg0: i32) -> (i32, i32) {
    %c0_i32 = arith.constant 0 : i32
    %c0_i32_0 = arith.constant 0 : i32
    %c0_i32_1 = arith.constant 0 : i32
    return %c0_i32, %c0_i32_0 : i32, i32
  }
  func.func @transform_6(%arg0: i32) -> (i32, i32) {
    %c0_i32 = arith.constant 0 : i32
    %c0_i32_0 = arith.constant 0 : i32
    return %arg0, %c0_i32 : i32, i32
  }
  func.func @transform_7(%arg0: i32) -> (i32, i32) {
    %c0_i32 = arith.constant 0 : i32
    %c0_i32_0 = arith.constant 0 : i32
    return %arg0, %c0_i32 : i32, i32
  }
}

module attributes {stable_mosaic.version = 11 : i64} {
  func.func @_lstm_cell_kernel(%arg0: i32, %arg1: memref<8x16xf32, #tpu.memory_space<vmem>>, %arg2: memref<8x128xf32, #tpu.memory_space<vmem>>, %arg3: memref<8x128xf32, #tpu.memory_space<vmem>>, %arg4: memref<16x512xf32, #tpu.memory_space<vmem>>, %arg5: memref<128x512xf32, #tpu.memory_space<vmem>>, %arg6: memref<1x512xf32, #tpu.memory_space<vmem>>, %arg7: memref<8x128xf32, #tpu.memory_space<vmem>>, %arg8: memref<8x128xf32, #tpu.memory_space<vmem>>) attributes {dimension_semantics = [#tpu.dimension_semantics<parallel>], iteration_bounds = array<i64: 1>, scalar_prefetch = 0 : i64, scratch_operands = 0 : i64, tpu.core_type = #tpu.core_type<tc>, window_params = [{transform_indices = @transform_0, window_bounds = array<i64: 8, 16>}, {transform_indices = @transform_1, window_bounds = array<i64: 8, 128>}, {transform_indices = @transform_2, window_bounds = array<i64: 8, 128>}, {pipeline_mode = #tpu.pipeline_mode<synchronous>, transform_indices = @transform_3, window_bounds = array<i64: 16, 512>}, {pipeline_mode = #tpu.pipeline_mode<synchronous>, transform_indices = @transform_4, window_bounds = array<i64: 128, 512>}, {pipeline_mode = #tpu.pipeline_mode<synchronous>, transform_indices = @transform_5, window_bounds = array<i64: 1, 512>}, {transform_indices = @transform_6, window_bounds = array<i64: 8, 128>}, {transform_indices = @transform_7, window_bounds = array<i64: 8, 128>}]} {
    %c0 = arith.constant 0 : index
    %c0_0 = arith.constant 0 : index
    %0 = vector.load %arg1[%c0, %c0_0] : memref<8x16xf32, #tpu.memory_space<vmem>>, vector<8x16xf32>
    %c0_1 = arith.constant 0 : index
    %c0_2 = arith.constant 0 : index
    %1 = vector.load %arg4[%c0_1, %c0_2] : memref<16x512xf32, #tpu.memory_space<vmem>>, vector<16x512xf32>
    %cst = arith.constant dense<0.000000e+00> : vector<8x512xf32>
    %2 = tpu.matmul %0, %1, %cst {dimension_numbers = #tpu.dot_dimension_numbers<[1], [0], [0], [1], [0, 0, 1, 1], [], []>} : vector<8x16xf32>, vector<16x512xf32>, vector<8x512xf32> -> vector<8x512xf32>
    %c0_3 = arith.constant 0 : index
    %c0_4 = arith.constant 0 : index
    %3 = vector.load %arg2[%c0_3, %c0_4] : memref<8x128xf32, #tpu.memory_space<vmem>>, vector<8x128xf32>
    %c0_5 = arith.constant 0 : index
    %c0_6 = arith.constant 0 : index
    %4 = vector.load %arg5[%c0_5, %c0_6] : memref<128x512xf32, #tpu.memory_space<vmem>>, vector<128x512xf32>
    %cst_7 = arith.constant dense<0.000000e+00> : vector<8x512xf32>
    %5 = tpu.matmul %3, %4, %cst_7 {dimension_numbers = #tpu.dot_dimension_numbers<[1], [0], [0], [1], [0, 0, 1, 1], [], []>} : vector<8x128xf32>, vector<128x512xf32>, vector<8x512xf32> -> vector<8x512xf32>
    %6 = arith.addf %2, %5 : vector<8x512xf32>
    %c0_8 = arith.constant 0 : index
    %c0_9 = arith.constant 0 : index
    %7 = vector.load %arg6[%c0_8, %c0_9] : memref<1x512xf32, #tpu.memory_space<vmem>>, vector<1x512xf32>
    %8 = vector.broadcast %7 : vector<1x512xf32> to vector<8x512xf32>
    %9 = arith.addf %6, %8 : vector<8x512xf32>
    %10 = vector.extract_strided_slice %9 {offsets = [0, 0], sizes = [8, 128], strides = [1, 1]} : vector<8x512xf32> to vector<8x128xf32>
    %cst_10 = arith.constant 5.000000e-01 : f32
    %11 = vector.broadcast %cst_10 : f32 to vector<8x128xf32>
    %12 = arith.mulf %11, %10 : vector<8x128xf32>
    %13 = math.tanh %12 : vector<8x128xf32>
    %cst_11 = arith.constant 5.000000e-01 : f32
    %14 = vector.broadcast %cst_11 : f32 to vector<8x128xf32>
    %15 = arith.mulf %14, %13 : vector<8x128xf32>
    %cst_12 = arith.constant 5.000000e-01 : f32
    %16 = vector.broadcast %cst_12 : f32 to vector<8x128xf32>
    %17 = arith.addf %15, %16 : vector<8x128xf32>
    %18 = vector.extract_strided_slice %9 {offsets = [0, 128], sizes = [8, 128], strides = [1, 1]} : vector<8x512xf32> to vector<8x128xf32>
    %cst_13 = arith.constant 5.000000e-01 : f32
    %19 = vector.broadcast %cst_13 : f32 to vector<8x128xf32>
    %20 = arith.mulf %19, %18 : vector<8x128xf32>
    %21 = math.tanh %20 : vector<8x128xf32>
    %cst_14 = arith.constant 5.000000e-01 : f32
    %22 = vector.broadcast %cst_14 : f32 to vector<8x128xf32>
    %23 = arith.mulf %22, %21 : vector<8x128xf32>
    %cst_15 = arith.constant 5.000000e-01 : f32
    %24 = vector.broadcast %cst_15 : f32 to vector<8x128xf32>
    %25 = arith.addf %23, %24 : vector<8x128xf32>
    %26 = vector.extract_strided_slice %9 {offsets = [0, 256], sizes = [8, 128], strides = [1, 1]} : vector<8x512xf32> to vector<8x128xf32>
    %27 = math.tanh %26 : vector<8x128xf32>
    %28 = vector.extract_strided_slice %9 {offsets = [0, 384], sizes = [8, 128], strides = [1, 1]} : vector<8x512xf32> to vector<8x128xf32>
    %cst_16 = arith.constant 5.000000e-01 : f32
    %29 = vector.broadcast %cst_16 : f32 to vector<8x128xf32>
    %30 = arith.mulf %29, %28 : vector<8x128xf32>
    %31 = math.tanh %30 : vector<8x128xf32>
    %cst_17 = arith.constant 5.000000e-01 : f32
    %32 = vector.broadcast %cst_17 : f32 to vector<8x128xf32>
    %33 = arith.mulf %32, %31 : vector<8x128xf32>
    %cst_18 = arith.constant 5.000000e-01 : f32
    %34 = vector.broadcast %cst_18 : f32 to vector<8x128xf32>
    %35 = arith.addf %33, %34 : vector<8x128xf32>
    %c0_19 = arith.constant 0 : index
    %c0_20 = arith.constant 0 : index
    %36 = vector.load %arg3[%c0_19, %c0_20] : memref<8x128xf32, #tpu.memory_space<vmem>>, vector<8x128xf32>
    %37 = arith.mulf %36, %25 : vector<8x128xf32>
    %38 = arith.mulf %17, %27 : vector<8x128xf32>
    %39 = arith.addf %37, %38 : vector<8x128xf32>
    %40 = math.tanh %39 : vector<8x128xf32>
    %41 = arith.mulf %35, %40 : vector<8x128xf32>
    %c0_21 = arith.constant 0 : index
    %c0_22 = arith.constant 0 : index
    %42 = vector.load %arg8[%c0_21, %c0_22] : memref<8x128xf32, #tpu.memory_space<vmem>>, vector<8x128xf32>
    tpu.vector_store %arg8[%c0_21, %c0_22], %39 {strides = array<i32>} : memref<8x128xf32, #tpu.memory_space<vmem>>, vector<8x128xf32>,
    %c0_23 = arith.constant 0 : index
    %c0_24 = arith.constant 0 : index
    %43 = vector.load %arg7[%c0_23, %c0_24] : memref<8x128xf32, #tpu.memory_space<vmem>>, vector<8x128xf32>
    tpu.vector_store %arg7[%c0_23, %c0_24], %41 {strides = array<i32>} : memref<8x128xf32, #tpu.memory_space<vmem>>, vector<8x128xf32>,
    return
  }
  func.func @transform_0(%arg0: i32) -> (i32, i32) {
    %c0_i32 = arith.constant 0 : i32
    %c0_i32_0 = arith.constant 0 : i32
    return %arg0, %c0_i32 : i32, i32
  }
  func.func @transform_1(%arg0: i32) -> (i32, i32) {
    %c0_i32 = arith.constant 0 : i32
    %c0_i32_0 = arith.constant 0 : i32
    return %arg0, %c0_i32 : i32, i32
  }
  func.func @transform_2(%arg0: i32) -> (i32, i32) {
    %c0_i32 = arith.constant 0 : i32
    %c0_i32_0 = arith.constant 0 : i32
    return %arg0, %c0_i32 : i32, i32
  }
  func.func @transform_3(%arg0: i32) -> (i32, i32) {
    %c0_i32 = arith.constant 0 : i32
    %c0_i32_0 = arith.constant 0 : i32
    %c0_i32_1 = arith.constant 0 : i32
    return %c0_i32, %c0_i32_0 : i32, i32
  }
  func.func @transform_4(%arg0: i32) -> (i32, i32) {
    %c0_i32 = arith.constant 0 : i32
    %c0_i32_0 = arith.constant 0 : i32
    %c0_i32_1 = arith.constant 0 : i32
    return %c0_i32, %c0_i32_0 : i32, i32
  }
  func.func @transform_5(%arg0: i32) -> (i32, i32) {
    %c0_i32 = arith.constant 0 : i32
    %c0_i32_0 = arith.constant 0 : i32
    %c0_i32_1 = arith.constant 0 : i32
    return %c0_i32, %c0_i32_0 : i32, i32
  }
  func.func @transform_6(%arg0: i32) -> (i32, i32) {
    %c0_i32 = arith.constant 0 : i32
    %c0_i32_0 = arith.constant 0 : i32
    return %arg0, %c0_i32 : i32, i32
  }
  func.func @transform_7(%arg0: i32) -> (i32, i32) {
    %c0_i32 = arith.constant 0 : i32
    %c0_i32_0 = arith.constant 0 : i32
    return %arg0, %c0_i32 : i32, i32
  }
}

</mosaic_0001>

<llo_original>
// kernel: tpu_custom_call.1
$region0: #{tpu_custom_call.1}
  #allocation0 [shape = 'u32[]', space=smem, size = 0x4, offset = 0x4, fixed_abs, tag = 'smem constant byte address 0x4 - core index']
  #allocation1 [shape = 'u32[72,128]{1,0:T(1,128)}', space=vmem, size = 0x9000, scoped, tag = 'internal scratch']
  %s0 = inlined_call_operand.vmem [shape: f32[8,16], index: 0, kind: input, shape index: {}]
  %s1 = inlined_call_operand.vmem [shape: f32[8,128], index: 1, kind: input, shape index: {}]
  %s2 = inlined_call_operand.hbm [shape: f32[8,128], index: 2, kind: input, shape index: {}, may-alias: {2,7}]
  %s3 = inlined_call_operand.hbm [shape: f32[16,512], index: 3, kind: input, shape index: {}]
  %s4 = inlined_call_operand.hbm [shape: f32[128,512], index: 4, kind: input, shape index: {}]
  %s5 = inlined_call_operand.hbm [shape: f32[1,512], index: 5, kind: input, shape index: {}]
  %s6 = inlined_call_operand.hbm [shape: f32[8,128], index: 6, kind: output, shape index: {0}]
  %s7 = inlined_call_operand.hbm [shape: f32[8,128], index: 7, kind: output, shape index: {1}, may-alias: {2,7}]
  %8 = xla_tuple %s6, %s7
  %s9 = sld [smem:[#allocation0]]
  $region58: #{tpu_custom_call.1} parent=0
    _
  %s11 = ssub.s32 1, %s9
  %s12 = scalar_select 0, %s11, %s9
  $region1: #{tpu_custom_call.1} parent=0
    #allocation2 [shape = 'u8[4096]{0}', space=vmem, size = 0x1000, scoped, tag = 'input window, operand 2, single buffered']
    #allocation3 [shape = 's32[1]{0}', space=sflag, size = 0x4, scoped, tag = 'scoped memory for tpu_custom_call.1']
    #allocation4 [shape = 's32[1]{0}', space=sflag, size = 0x4, scoped, tag = 'scoped memory for tpu_custom_call.1']
    #allocation5 [shape = 'u8[32768]{0}', space=vmem, size = 0x8000, scoped, tag = 'input window, operand 3, single buffered']
    #allocation6 [shape = 's32[1]{0}', space=sflag, size = 0x4, scoped, tag = 'scoped memory for tpu_custom_call.1']
    #allocation7 [shape = 'u8[262144]{0}', space=vmem, size = 0x40000, scoped, tag = 'input window, operand 4, single buffered']
    #allocation8 [shape = 'u8[2048]{0}', space=vmem, size = 0x800, scoped, tag = 'input window, operand 5, single buffered']
    #allocation9 [shape = 's32[1]{0}', space=sflag, size = 0x4, scoped, tag = 'scoped memory for tpu_custom_call.1']
    #allocation10 [shape = 'u8[4096]{0}', space=vmem, size = 0x1000, scoped, tag = 'output window, operand 0, single buffered']
    #allocation11 [shape = 'u8[4096]{0}', space=vmem, size = 0x1000, scoped, tag = 'output window, operand 1, single buffered']
    #allocation12 [shape = 's32[1]{0}', space=sflag, size = 0x4, scoped, tag = 'scoped memory for tpu_custom_call.1']
    %13 = vsyncpa [#allocation3], 0
    %14 = vsyncpa [#allocation6], 0
    %15 = vsyncpa [#allocation9], 0
    %16 = vsyncpa [#allocation4], 0
    %17 = vsyncpa [#allocation12], 0
    // Predicated region
    $region2: #{tpu_custom_call.1} parent=1 // pred_check
      _
    $region3: #{tpu_custom_call.1} parent=1 // pred_check_branch
      %19 = sbr.rel (0) target = $region5
    $region4: #{tpu_custom_call.1} parent=1 // pred_region
      _
    $region5: #{tpu_custom_call.1} parent=1 // pred_fallthru
      _
    // Predicated region
    $region6: #{tpu_custom_call.1} parent=1 // pred_check
      _
    $region7: #{tpu_custom_call.1} parent=1 // pred_check_branch
      %21 = sbr.rel (0) target = $region9
    $region8: #{tpu_custom_call.1} parent=1 // pred_region
      _
    $region9: #{tpu_custom_call.1} parent=1 // pred_fallthru
      _
    // Predicated region
    $region10: #{tpu_custom_call.1} parent=1 // pred_check
      _
    $region11: #{tpu_custom_call.1} parent=1 // pred_check_branch
      %23 = sbr.rel (0) target = $region13
    $region12: #{tpu_custom_call.1} parent=1 // pred_region
      %25 = vsyncadd [#allocation3], 0
      %s27 = sshll.u32 %s2, 4
      %s28 = int_to_ptr.hbm [resolvable:$true] %s27
      %s29 = sshll.u32 [#allocation2], 4
      %s30 = int_to_ptr.vmem [resolvable:$true] %s29
      %32 = dma.hbm_to_vmem [thread:$0]  %s28, 128, %s30, [#allocation3]
    $region13: #{tpu_custom_call.1} parent=1 // pred_fallthru
      _
    // Predicated region
    $region14: #{tpu_custom_call.1} parent=1 // pred_check
      _
    $region15: #{tpu_custom_call.1} parent=1 // pred_check_branch
      %34 = sbr.rel (0) target = $region17
    $region16: #{tpu_custom_call.1} parent=1 // pred_region
      %36 = vsyncadd [#allocation6], 0
      %s37 = sshll.u32 %s3, 4
      %s38 = int_to_ptr.hbm [resolvable:$true] %s37
      %s39 = sshll.u32 [#allocation5], 4
      %s40 = int_to_ptr.vmem [resolvable:$true] %s39
      %45 = dma.hbm_to_vmem [thread:$0]  %s38, 1024, %s40, [#allocation6], 512, 512, 32
    $region17: #{tpu_custom_call.1} parent=1 // pred_fallthru
      _
    // Predicated region
    $region18: #{tpu_custom_call.1} parent=1 // pred_check
      _
    $region19: #{tpu_custom_call.1} parent=1 // pred_check_branch
      %47 = sbr.rel (0) target = $region21
    $region20: #{tpu_custom_call.1} parent=1 // pred_region
      %49 = vsyncadd [#allocation6], 0
      %s50 = sshll.u32 %s4, 4
      %s51 = int_to_ptr.hbm [resolvable:$true] %s50
      %s52 = sshll.u32 [#allocation7], 4
      %s53 = int_to_ptr.vmem [resolvable:$true] %s52
      %58 = dma.hbm_to_vmem [thread:$0]  %s51, 8192, %s53, [#allocation6], 512, 512, 32
    $region21: #{tpu_custom_call.1} parent=1 // pred_fallthru
      _
    // Predicated region
    $region22: #{tpu_custom_call.1} parent=1 // pred_check
      _
    $region23: #{tpu_custom_call.1} parent=1 // pred_check_branch
      %60 = sbr.rel (0) target = $region25
    $region24: #{tpu_custom_call.1} parent=1 // pred_region
      %62 = vsyncadd [#allocation9], 0
      %s64 = sshll.u32 %s5, 4
      %s65 = int_to_ptr.hbm [resolvable:$true] %s64
      %s66 = sshll.u32 [#allocation8], 4
      %s67 = int_to_ptr.vmem [resolvable:$true] %s66
      %69 = dma.hbm_to_vmem [thread:$0]  %s65, 64, %s67, [#allocation9]
    $region25: #{tpu_custom_call.1} parent=1 // pred_fallthru
      _
    // Predicated region
    $region26: #{tpu_custom_call.1} parent=1 // pred_check
      _
    $region27: #{tpu_custom_call.1} parent=1 // pred_check_branch
      %71 = sbr.rel (0) target = $region29
    $region28: #{tpu_custom_call.1} parent=1 // pred_region
      %73 = dma.done [#allocation3], 128
    $region29: #{tpu_custom_call.1} parent=1 // pred_fallthru
      _
    // Predicated region
    $region30: #{tpu_custom_call.1} parent=1 // pred_check
      _
    $region31: #{tpu_custom_call.1} parent=1 // pred_check_branch
      %75 = sbr.rel (0) target = $region33
    $region32: #{tpu_custom_call.1} parent=1 // pred_region
      %77 = dma.done [#allocation6], 1024
    $region33: #{tpu_custom_call.1} parent=1 // pred_fallthru
      _
    // Predicated region
    $region34: #{tpu_custom_call.1} parent=1 // pred_check
      _
    $region35: #{tpu_custom_call.1} parent=1 // pred_check_branch
      %79 = sbr.rel (0) target = $region37
    $region36: #{tpu_custom_call.1} parent=1 // pred_region
      %81 = dma.done [#allocation6], 8192
    $region37: #{tpu_custom_call.1} parent=1 // pred_fallthru
      _
    // Predicated region
    $region38: #{tpu_custom_call.1} parent=1 // pred_check
      _
    $region39: #{tpu_custom_call.1} parent=1 // pred_check_branch
      %83 = sbr.rel (0) target = $region41
    $region40: #{tpu_custom_call.1} parent=1 // pred_region
      %85 = dma.done [#allocation9], 64
    $region41: #{tpu_custom_call.1} parent=1 // pred_fallthru
      _
    %v86 = vld [vmem:[%s0] sm:$0xff]
    %v87 = vld [vmem:[#allocation5] sm:$0xff]
    %v88 = vld [vmem:[#allocation5 + $0x8] sm:$0xff]
    %v89 = vld [vmem:[#allocation5 + $0x10] sm:$0xff]
    %v90 = vld [vmem:[#allocation5 + $0x18] sm:$0xff]
    %v91 = vld [vmem:[#allocation5 + $0x20] sm:$0xff]
    %v92 = vld [vmem:[#allocation5 + $0x28] sm:$0xff]
    %v93 = vld [vmem:[#allocation5 + $0x30] sm:$0xff]
    %v94 = vld [vmem:[#allocation5 + $0x38] sm:$0xff]
    %v95 = vld [vmem:[%s1] sm:$0xff]
    %v96 = vld [vmem:[#allocation7] sm:$0xff]
    %v97 = vld [vmem:[#allocation7 + $0x8] sm:$0xff]
    %v98 = vld [vmem:[#allocation7 + $0x10] sm:$0xff]
    %v99 = vld [vmem:[#allocation7 + $0x18] sm:$0xff]
    %v100 = vld [vmem:[#allocation7 + $0x20] sm:$0xff]
    %v101 = vld [vmem:[#allocation7 + $0x28] sm:$0xff]
    %v102 = vld [vmem:[#allocation7 + $0x30] sm:$0xff]
    %v103 = vld [vmem:[#allocation7 + $0x38] sm:$0xff]
    %v104 = vld [vmem:[#allocation7 + $0x40] sm:$0xff]
    %v105 = vld [vmem:[#allocation7 + $0x48] sm:$0xff]
    %v106 = vld [vmem:[#allocation7 + $0x50] sm:$0xff]
    %v107 = vld [vmem:[#allocation7 + $0x58] sm:$0xff]
    %v108 = vld [vmem:[#allocation7 + $0x60] sm:$0xff]
    %v109 = vld [vmem:[#allocation7 + $0x68] sm:$0xff]
    %v110 = vld [vmem:[#allocation7 + $0x70] sm:$0xff]
    %v111 = vld [vmem:[#allocation7 + $0x78] sm:$0xff]
    %v112 = vld [vmem:[#allocation7 + $0x80] sm:$0xff]
    %v113 = vld [vmem:[#allocation7 + $0x88] sm:$0xff]
    %v114 = vld [vmem:[#allocation7 + $0x90] sm:$0xff]
    %v115 = vld [vmem:[#allocation7 + $0x98] sm:$0xff]
    %v116 = vld [vmem:[#allocation7 + $0xa0] sm:$0xff]
    %v117 = vld [vmem:[#allocation7 + $0xa8] sm:$0xff]
    %v118 = vld [vmem:[#allocation7 + $0xb0] sm:$0xff]
    %v119 = vld [vmem:[#allocation7 + $0xb8] sm:$0xff]
    %v120 = vld [vmem:[#allocation7 + $0xc0] sm:$0xff]
    %v121 = vld [vmem:[#allocation7 + $0xc8] sm:$0xff]
    %v122 = vld [vmem:[#allocation7 + $0xd0] sm:$0xff]
    %v123 = vld [vmem:[#allocation7 + $0xd8] sm:$0xff]
    %v124 = vld [vmem:[#allocation7 + $0xe0] sm:$0xff]
    %v125 = vld [vmem:[#allocation7 + $0xe8] sm:$0xff]
    %v126 = vld [vmem:[#allocation7 + $0xf0] sm:$0xff]
    %v127 = vld [vmem:[#allocation7 + $0xf8] sm:$0xff]
    %v128 = vld [vmem:[#allocation7 + $0x100] sm:$0xff]
    %v129 = vld [vmem:[#allocation7 + $0x108] sm:$0xff]
    %v130 = vld [vmem:[#allocation7 + $0x110] sm:$0xff]
    %v131 = vld [vmem:[#allocation7 + $0x118] sm:$0xff]
    %v132 = vld [vmem:[#allocation7 + $0x120] sm:$0xff]
    %v133 = vld [vmem:[#allocation7 + $0x128] sm:$0xff]
    %v134 = vld [vmem:[#allocation7 + $0x130] sm:$0xff]
    %v135 = vld [vmem:[#allocation7 + $0x138] sm:$0xff]
    %v136 = vld [vmem:[#allocation7 + $0x140] sm:$0xff]
    %v137 = vld [vmem:[#allocation7 + $0x148] sm:$0xff]
    %v138 = vld [vmem:[#allocation7 + $0x150] sm:$0xff]
    %v139 = vld [vmem:[#allocation7 + $0x158] sm:$0xff]
    %v140 = vld [vmem:[#allocation7 + $0x160] sm:$0xff]
    %v141 = vld [vmem:[#allocation7 + $0x168] sm:$0xff]
    %v142 = vld [vmem:[#allocation7 + $0x170] sm:$0xff]
    %v143 = vld [vmem:[#allocation7 + $0x178] sm:$0xff]
    %v144 = vld [vmem:[#allocation7 + $0x180] sm:$0xff]
    %v145 = vld [vmem:[#allocation7 + $0x188] sm:$0xff]
    %v146 = vld [vmem:[#allocation7 + $0x190] sm:$0xff]
    %v147 = vld [vmem:[#allocation7 + $0x198] sm:$0xff]
    %v148 = vld [vmem:[#allocation7 + $0x1a0] sm:$0xff]
    %v149 = vld [vmem:[#allocation7 + $0x1a8] sm:$0xff]
    %v150 = vld [vmem:[#allocation7 + $0x1b0] sm:$0xff]
    %v151 = vld [vmem:[#allocation7 + $0x1b8] sm:$0xff]
    %v152 = vld [vmem:[#allocation7 + $0x1c0] sm:$0xff]
    %v153 = vld [vmem:[#allocation7 + $0x1c8] sm:$0xff]
    %v154 = vld [vmem:[#allocation7 + $0x1d0] sm:$0xff]
    %v155 = vld [vmem:[#allocation7 + $0x1d8] sm:$0xff]
    %v156 = vld [vmem:[#allocation7 + $0x1e0] sm:$0xff]
    %v157 = vld [vmem:[#allocation7 + $0x1e8] sm:$0xff]
    %v158 = vld [vmem:[#allocation7 + $0x1f0] sm:$0xff]
    %v159 = vld [vmem:[#allocation7 + $0x1f8] sm:$0xff]
    %160 = vmatpush.msra.mxu0 %v156
    %161 = vmatpush.msra.mxu0 %v152
    %162 = vmatpush.msra.mxu0 %v148
    %163 = vmatpush.msra.mxu0 %v144
    %164 = vmatpush.msra.mxu0 %v140
    %165 = vmatpush.msra.mxu0 %v136
    %166 = vmatpush.msra.mxu0 %v132
    %167 = vmatpush.msra.mxu0 %v128
    %168 = vmatpush.msra.mxu0 %v124
    %169 = vmatpush.msra.mxu0 %v120
    %170 = vmatpush.msra.mxu0 %v116
    %171 = vmatpush.msra.mxu0 %v112
    %172 = vmatpush.msra.mxu0 %v108
    %173 = vmatpush.msra.mxu0 %v104
    %174 = vmatpush.msra.mxu0 %v100
    %175 = vmatpush.msra.mxu0 %v96
    %176 = vmatmul.f32.gmra.mxu0 %v95
    %v177 = vpop.f32.mrf.mxu0
    %v178 = vadd.f32 0.0, %v177
    %179 = vdwg.mxu0
    %180 = vmatpush.msra.mxu0 %v157
    %181 = vmatpush.msra.mxu0 %v153
    %182 = vmatpush.msra.mxu0 %v149
    %183 = vmatpush.msra.mxu0 %v145
    %184 = vmatpush.msra.mxu0 %v141
    %185 = vmatpush.msra.mxu0 %v137
    %186 = vmatpush.msra.mxu0 %v133
    %187 = vmatpush.msra.mxu0 %v129
    %188 = vmatpush.msra.mxu0 %v125
    %189 = vmatpush.msra.mxu0 %v121
    %190 = vmatpush.msra.mxu0 %v117
    %191 = vmatpush.msra.mxu0 %v113
    %192 = vmatpush.msra.mxu0 %v109
    %193 = vmatpush.msra.mxu0 %v105
    %194 = vmatpush.msra.mxu0 %v101
    %195 = vmatpush.msra.mxu0 %v97
    %196 = vmatmul.f32.gmra.mxu0 %v95
    %v197 = vpop.f32.mrf.mxu0
    %v198 = vadd.f32 0.0, %v197
    %199 = vdwg.mxu0
    %200 = vmatpush.msra.mxu0 %v158
    %201 = vmatpush.msra.mxu0 %v154
    %202 = vmatpush.msra.mxu0 %v150
    %203 = vmatpush.msra.mxu0 %v146
    %204 = vmatpush.msra.mxu0 %v142
    %205 = vmatpush.msra.mxu0 %v138
    %206 = vmatpush.msra.mxu0 %v134
    %207 = vmatpush.msra.mxu0 %v130
    %208 = vmatpush.msra.mxu0 %v126
    %209 = vmatpush.msra.mxu0 %v122
    %210 = vmatpush.msra.mxu0 %v118
    %211 = vmatpush.msra.mxu0 %v114
    %212 = vmatpush.msra.mxu0 %v110
    %213 = vmatpush.msra.mxu0 %v106
    %214 = vmatpush.msra.mxu0 %v102
    %215 = vmatpush.msra.mxu0 %v98
    %216 = vmatmul.f32.gmra.mxu0 %v95
    %v217 = vpop.f32.mrf.mxu0
    %v218 = vadd.f32 0.0, %v217
    %219 = vdwg.mxu0
    %220 = vmatpush.msra.mxu0 %v159
    %221 = vmatpush.msra.mxu0 %v155
    %222 = vmatpush.msra.mxu0 %v151
    %223 = vmatpush.msra.mxu0 %v147
    %224 = vmatpush.msra.mxu0 %v143
    %225 = vmatpush.msra.mxu0 %v139
    %226 = vmatpush.msra.mxu0 %v135
    %227 = vmatpush.msra.mxu0 %v131
    %228 = vmatpush.msra.mxu0 %v127
    %229 = vmatpush.msra.mxu0 %v123
    %230 = vmatpush.msra.mxu0 %v119
    %231 = vmatpush.msra.mxu0 %v115
    %232 = vmatpush.msra.mxu0 %v111
    %233 = vmatpush.msra.mxu0 %v107
    %234 = vmatpush.msra.mxu0 %v103
    %235 = vmatpush.msra.mxu0 %v99
    %236 = vmatmul.f32.gmra.mxu0 %v95
    %v237 = vpop.f32.mrf.mxu0
    %v238 = vadd.f32 0.0, %v237
    %239 = vdwg.mxu0
    %vm240 = vcmask 130048
    %v242 = vsel %vm240, %v86, 0
    %244 = vmatpush.msra.mxu0 0.0
    %245 = vmatpush.msra.mxu0 0.0
    %246 = vmatpush.msra.mxu0 0.0
    %247 = vmatpush.msra.mxu0 0.0
    %248 = vmatpush.msra.mxu0 0.0
    %249 = vmatpush.msra.mxu0 0.0
    %250 = vmatpush.msra.mxu0 0.0
    %251 = vmatpush.msra.mxu0 0.0
    %252 = vmatpush.msra.mxu0 0.0
    %253 = vmatpush.msra.mxu0 0.0
    %254 = vmatpush.msra.mxu0 0.0
    %255 = vmatpush.msra.mxu0 0.0
    %256 = vmatpush.msra.mxu0 0.0
    %257 = vmatpush.msra.mxu0 0.0
    %258 = vmatpush.msra.mxu0 %v91
    %259 = vmatpush.msra.mxu0 %v87
    %260 = vmatmul.f32.gmra.mxu0 %v242
    %v261 = vpop.f32.mrf.mxu0
    %v262 = vadd.f32 %v178, %v261
    %263 = vdwg.mxu0
    %264 = vmatpush.msra.mxu0 0.0
    %265 = vmatpush.msra.mxu0 0.0
    %266 = vmatpush.msra.mxu0 0.0
    %267 = vmatpush.msra.mxu0 0.0
    %268 = vmatpush.msra.mxu0 0.0
    %269 = vmatpush.msra.mxu0 0.0
    %270 = vmatpush.msra.mxu0 0.0
    %271 = vmatpush.msra.mxu0 0.0
    %272 = vmatpush.msra.mxu0 0.0
    %273 = vmatpush.msra.mxu0 0.0
    %274 = vmatpush.msra.mxu0 0.0
    %275 = vmatpush.msra.mxu0 0.0
    %276 = vmatpush.msra.mxu0 0.0
    %277 = vmatpush.msra.mxu0 0.0
    %278 = vmatpush.msra.mxu0 %v92
    %279 = vmatpush.msra.mxu0 %v88
    %280 = vmatmul.f32.gmra.mxu0 %v242
    %v281 = vpop.f32.mrf.mxu0
    %v282 = vadd.f32 %v198, %v281
    %283 = vdwg.mxu0
    %284 = vmatpush.msra.mxu0 0.0
    %285 = vmatpush.msra.mxu0 0.0
    %286 = vmatpush.msra.mxu0 0.0
    %287 = vmatpush.msra.mxu0 0.0
    %288 = vmatpush.msra.mxu0 0.0
    %289 = vmatpush.msra.mxu0 0.0
    %290 = vmatpush.msra.mxu0 0.0
    %291 = vmatpush.msra.mxu0 0.0
    %292 = vmatpush.msra.mxu0 0.0
    %293 = vmatpush.msra.mxu0 0.0
    %294 = vmatpush.msra.mxu0 0.0
    %295 = vmatpush.msra.mxu0 0.0
    %296 = vmatpush.msra.mxu0 0.0
    %297 = vmatpush.msra.mxu0 0.0
    %298 = vmatpush.msra.mxu0 %v93
    %299 = vmatpush.msra.mxu0 %v89
    %300 = vmatmul.f32.gmra.mxu0 %v242
    %v301 = vpop.f32.mrf.mxu0
    %v302 = vadd.f32 %v218, %v301
    %303 = vdwg.mxu0
    %304 = vmatpush.msra.mxu0 0.0
    %305 = vmatpush.msra.mxu0 0.0
    %306 = vmatpush.msra.mxu0 0.0
    %307 = vmatpush.msra.mxu0 0.0
    %308 = vmatpush.msra.mxu0 0.0
    %309 = vmatpush.msra.mxu0 0.0
    %310 = vmatpush.msra.mxu0 0.0
    %311 = vmatpush.msra.mxu0 0.0
    %312 = vmatpush.msra.mxu0 0.0
    %313 = vmatpush.msra.mxu0 0.0
    %314 = vmatpush.msra.mxu0 0.0
    %315 = vmatpush.msra.mxu0 0.0
    %316 = vmatpush.msra.mxu0 0.0
    %317 = vmatpush.msra.mxu0 0.0
    %318 = vmatpush.msra.mxu0 %v94
    %319 = vmatpush.msra.mxu0 %v90
    %320 = vmatmul.f32.gmra.mxu0 %v242
    %v321 = vpop.f32.mrf.mxu0
    %v322 = vadd.f32 %v238, %v321
    %323 = vdwg.mxu0
    %v324 = vld [vmem:[#allocation8] sm:$0xf]
    %v326 = vperm.slane %v324, 0
    %v327 = vperm.slane %v324, 1
    %v328 = vperm.slane %v324, 2
    %v329 = vperm.slane %v324, 3
    %v334 = vadd.f32 %v262, %v326
    %v335 = vadd.f32 %v282, %v327
    %v336 = vadd.f32 %v302, %v328
    %v337 = vadd.f32 %v322, %v329
    %v338 = vmul.f32 %v334, 0.5
    %v339 = vtanh.pop %v338
    %v340 = vmul.f32 %v339, 0.5
    %v341 = vadd.f32 %v340, 0.5
    %v342 = vmul.f32 %v335, 0.5
    %v343 = vtanh.pop %v342
    %v344 = vmul.f32 %v343, 0.5
    %v345 = vadd.f32 %v344, 0.5
    %v346 = vtanh.pop %v336
    %v347 = vmul.f32 %v337, 0.5
    %v348 = vtanh.pop %v347
    %v349 = vmul.f32 %v348, 0.5
    %v350 = vadd.f32 %v349, 0.5
    %v351 = vld [vmem:[#allocation2] sm:$0xff]
    %v352 = vmul.f32 %v351, %v345
    %v353 = vmul.f32 %v341, %v346
    %v354 = vadd.f32 %v352, %v353
    %v355 = vtanh.pop %v354
    %v356 = vmul.f32 %v350, %v355
    %357 = vst [vmem:[#allocation11] sm:$0xff] %v354
    %358 = vst [vmem:[#allocation10] sm:$0xff] %v356
    // Predicated region
    $region42: #{tpu_custom_call.1} parent=1 // pred_check
      _
    $region43: #{tpu_custom_call.1} parent=1 // pred_check_branch
      %360 = sbr.rel (0) target = $region45
    $region44: #{tpu_custom_call.1} parent=1 // pred_region
      %362 = vsyncadd [#allocation4], 0
      %s364 = sshll.u32 [#allocation10], 4
      %s365 = int_to_ptr.vmem [resolvable:$true] %s364
      %s366 = sshll.u32 %s6, 4
      %s367 = int_to_ptr.hbm [resolvable:$true] %s366
      %369 = dma.vmem_to_hbm [thread:$0]  %s365, 128, %s367, [#allocation4]
    $region45: #{tpu_custom_call.1} parent=1 // pred_fallthru
      _
    // Predicated region
    $region46: #{tpu_custom_call.1} parent=1 // pred_check
      _
    $region47: #{tpu_custom_call.1} parent=1 // pred_check_branch
      %371 = sbr.rel (0) target = $region49
    $region48: #{tpu_custom_call.1} parent=1 // pred_region
      %373 = vsyncadd [#allocation12], 0
      %s375 = sshll.u32 [#allocation11], 4
      %s376 = int_to_ptr.vmem [resolvable:$true] %s375
      %s377 = sshll.u32 %s7, 4
      %s378 = int_to_ptr.hbm [resolvable:$true] %s377
      %380 = dma.vmem_to_hbm [thread:$0]  %s376, 128, %s378, [#allocation12]
    $region49: #{tpu_custom_call.1} parent=1 // pred_fallthru
      _
    // Predicated region
    $region50: #{tpu_custom_call.1} parent=1 // pred_check
      _
    $region51: #{tpu_custom_call.1} parent=1 // pred_check_branch
      %382 = sbr.rel (0) target = $region53
    $region52: #{tpu_custom_call.1} parent=1 // pred_region
      %384 = dma.done [#allocation4], 128
    $region53: #{tpu_custom_call.1} parent=1 // pred_fallthru
      _
    // Predicated region
    $region54: #{tpu_custom_call.1} parent=1 // pred_check
      _
    $region55: #{tpu_custom_call.1} parent=1 // pred_check_branch
      %386 = sbr.rel (0) target = $region57
    $region56: #{tpu_custom_call.1} parent=1 // pred_region
      %388 = dma.done [#allocation12], 128
    $region57: #{tpu_custom_call.1} parent=1 // pred_fallthru
      _
    %389 = vsyncpa [#allocation3], 1
    %390 = vsyncpa [#allocation6], 1
    %391 = vsyncpa [#allocation9], 1
    %392 = vsyncpa [#allocation4], 1
    %393 = vsyncpa [#allocation12], 1

// kernel: tpu_custom_call.1
$region0: #{tpu_custom_call.1}
  #allocation0 [shape = 'u32[]', space=smem, size = 0x4, offset = 0x4, fixed_abs, tag = 'smem constant byte address 0x4 - core index']
  #allocation1 [shape = 'u32[72,128]{1,0:T(1,128)}', space=vmem, size = 0x9000, scoped, tag = 'internal scratch']
  %s0 = inlined_call_operand.vmem [shape: f32[8,16], index: 0, kind: input, shape index: {}]
  %s1 = inlined_call_operand.vmem [shape: f32[8,128], index: 1, kind: input, shape index: {}]
  %s2 = inlined_call_operand.hbm [shape: f32[8,128], index: 2, kind: input, shape index: {}, may-alias: {2,7}]
  %s3 = inlined_call_operand.hbm [shape: f32[16,512], index: 3, kind: input, shape index: {}]
  %s4 = inlined_call_operand.hbm [shape: f32[128,512], index: 4, kind: input, shape index: {}]
  %s5 = inlined_call_operand.hbm [shape: f32[1,512], index: 5, kind: input, shape index: {}]
  %s6 = inlined_call_operand.hbm [shape: f32[8,128], index: 6, kind: output, shape index: {0}]
  %s7 = inlined_call_operand.hbm [shape: f32[8,128], index: 7, kind: output, shape index: {1}, may-alias: {2,7}]
  %8 = xla_tuple %s6, %s7
  %s9 = sld [smem:[#allocation0]]
  $region58: #{tpu_custom_call.1} parent=0
    _
  %s11 = ssub.s32 1, %s9
  %s12 = scalar_select 0, %s11, %s9
  $region1: #{tpu_custom_call.1} parent=0
    #allocation2 [shape = 'u8[4096]{0}', space=vmem, size = 0x1000, scoped, tag = 'input window, operand 2, single buffered']
    #allocation3 [shape = 's32[1]{0}', space=sflag, size = 0x4, scoped, tag = 'scoped memory for tpu_custom_call.1']
    #allocation4 [shape = 's32[1]{0}', space=sflag, size = 0x4, scoped, tag = 'scoped memory for tpu_custom_call.1']
    #allocation5 [shape = 'u8[32768]{0}', space=vmem, size = 0x8000, scoped, tag = 'input window, operand 3, single buffered']
    #allocation6 [shape = 's32[1]{0}', space=sflag, size = 0x4, scoped, tag = 'scoped memory for tpu_custom_call.1']
    #allocation7 [shape = 'u8[262144]{0}', space=vmem, size = 0x40000, scoped, tag = 'input window, operand 4, single buffered']
    #allocation8 [shape = 'u8[2048]{0}', space=vmem, size = 0x800, scoped, tag = 'input window, operand 5, single buffered']
    #allocation9 [shape = 's32[1]{0}', space=sflag, size = 0x4, scoped, tag = 'scoped memory for tpu_custom_call.1']
    #allocation10 [shape = 'u8[4096]{0}', space=vmem, size = 0x1000, scoped, tag = 'output window, operand 0, single buffered']
    #allocation11 [shape = 'u8[4096]{0}', space=vmem, size = 0x1000, scoped, tag = 'output window, operand 1, single buffered']
    #allocation12 [shape = 's32[1]{0}', space=sflag, size = 0x4, scoped, tag = 'scoped memory for tpu_custom_call.1']
    %13 = vsyncpa [#allocation3], 0
    %14 = vsyncpa [#allocation6], 0
    %15 = vsyncpa [#allocation9], 0
    %16 = vsyncpa [#allocation4], 0
    %17 = vsyncpa [#allocation12], 0
    // Predicated region
    $region2: #{tpu_custom_call.1} parent=1 // pred_check
      _
    $region3: #{tpu_custom_call.1} parent=1 // pred_check_branch
      %19 = sbr.rel (0) target = $region5
    $region4: #{tpu_custom_call.1} parent=1 // pred_region
      _
    $region5: #{tpu_custom_call.1} parent=1 // pred_fallthru
      _
    // Predicated region
    $region6: #{tpu_custom_call.1} parent=1 // pred_check
      _
    $region7: #{tpu_custom_call.1} parent=1 // pred_check_branch
      %21 = sbr.rel (0) target = $region9
    $region8: #{tpu_custom_call.1} parent=1 // pred_region
      _
    $region9: #{tpu_custom_call.1} parent=1 // pred_fallthru
      _
    // Predicated region
    $region10: #{tpu_custom_call.1} parent=1 // pred_check
      _
    $region11: #{tpu_custom_call.1} parent=1 // pred_check_branch
      %23 = sbr.rel (0) target = $region13
    $region12: #{tpu_custom_call.1} parent=1 // pred_region
      %25 = vsyncadd [#allocation3], 0
      %s27 = sshll.u32 %s2, 4
      %s28 = int_to_ptr.hbm [resolvable:$true] %s27
      %s29 = sshll.u32 [#allocation2], 4
      %s30 = int_to_ptr.vmem [resolvable:$true] %s29
      %32 = dma.hbm_to_vmem [thread:$0]  %s28, 128, %s30, [#allocation3]
    $region13: #{tpu_custom_call.1} parent=1 // pred_fallthru
      _
    // Predicated region
    $region14: #{tpu_custom_call.1} parent=1 // pred_check
      _
    $region15: #{tpu_custom_call.1} parent=1 // pred_check_branch
      %34 = sbr.rel (0) target = $region17
    $region16: #{tpu_custom_call.1} parent=1 // pred_region
      %36 = vsyncadd [#allocation6], 0
      %s37 = sshll.u32 %s3, 4
      %s38 = int_to_ptr.hbm [resolvable:$true] %s37
      %s39 = sshll.u32 [#allocation5], 4
      %s40 = int_to_ptr.vmem [resolvable:$true] %s39
      %45 = dma.hbm_to_vmem [thread:$0]  %s38, 1024, %s40, [#allocation6], 512, 512, 32
    $region17: #{tpu_custom_call.1} parent=1 // pred_fallthru
      _
    // Predicated region
    $region18: #{tpu_custom_call.1} parent=1 // pred_check
      _
    $region19: #{tpu_custom_call.1} parent=1 // pred_check_branch
      %47 = sbr.rel (0) target = $region21
    $region20: #{tpu_custom_call.1} parent=1 // pred_region
      %49 = vsyncadd [#allocation6], 0
      %s50 = sshll.u32 %s4, 4
      %s51 = int_to_ptr.hbm [resolvable:$true] %s50
      %s52 = sshll.u32 [#allocation7], 4
      %s53 = int_to_ptr.vmem [resolvable:$true] %s52
      %58 = dma.hbm_to_vmem [thread:$0]  %s51, 8192, %s53, [#allocation6], 512, 512, 32
    $region21: #{tpu_custom_call.1} parent=1 // pred_fallthru
      _
    // Predicated region
    $region22: #{tpu_custom_call.1} parent=1 // pred_check
      _
    $region23: #{tpu_custom_call.1} parent=1 // pred_check_branch
      %60 = sbr.rel (0) target = $region25
    $region24: #{tpu_custom_call.1} parent=1 // pred_region
      %62 = vsyncadd [#allocation9], 0
      %s64 = sshll.u32 %s5, 4
      %s65 = int_to_ptr.hbm [resolvable:$true] %s64
      %s66 = sshll.u32 [#allocation8], 4
      %s67 = int_to_ptr.vmem [resolvable:$true] %s66
      %69 = dma.hbm_to_vmem [thread:$0]  %s65, 64, %s67, [#allocation9]
    $region25: #{tpu_custom_call.1} parent=1 // pred_fallthru
      _
    // Predicated region
    $region26: #{tpu_custom_call.1} parent=1 // pred_check
      _
    $region27: #{tpu_custom_call.1} parent=1 // pred_check_branch
      %71 = sbr.rel (0) target = $region29
    $region28: #{tpu_custom_call.1} parent=1 // pred_region
      %73 = dma.done [#allocation3], 128
    $region29: #{tpu_custom_call.1} parent=1 // pred_fallthru
      _
    // Predicated region
    $region30: #{tpu_custom_call.1} parent=1 // pred_check
      _
    $region31: #{tpu_custom_call.1} parent=1 // pred_check_branch
      %75 = sbr.rel (0) target = $region33
    $region32: #{tpu_custom_call.1} parent=1 // pred_region
      %77 = dma.done [#allocation6], 1024
    $region33: #{tpu_custom_call.1} parent=1 // pred_fallthru
      _
    // Predicated region
    $region34: #{tpu_custom_call.1} parent=1 // pred_check
      _
    $region35: #{tpu_custom_call.1} parent=1 // pred_check_branch
      %79 = sbr.rel (0) target = $region37
    $region36: #{tpu_custom_call.1} parent=1 // pred_region
      %81 = dma.done [#allocation6], 8192
    $region37: #{tpu_custom_call.1} parent=1 // pred_fallthru
      _
    // Predicated region
    $region38: #{tpu_custom_call.1} parent=1 // pred_check
      _
    $region39: #{tpu_custom_call.1} parent=1 // pred_check_branch
      %83 = sbr.rel (0) target = $region41
    $region40: #{tpu_custom_call.1} parent=1 // pred_region
      %85 = dma.done [#allocation9], 64
    $region41: #{tpu_custom_call.1} parent=1 // pred_fallthru
      _
    %v86 = vld [vmem:[%s0] sm:$0xff]
    %v87 = vld [vmem:[#allocation5] sm:$0xff]
    %v88 = vld [vmem:[#allocation5 + $0x8] sm:$0xff]
    %v89 = vld [vmem:[#allocation5 + $0x10] sm:$0xff]
    %v90 = vld [vmem:[#allocation5 + $0x18] sm:$0xff]
    %v91 = vld [vmem:[#allocation5 + $0x20] sm:$0xff]
    %v92 = vld [vmem:[#allocation5 + $0x28] sm:$0xff]
    %v93 = vld [vmem:[#allocation5 + $0x30] sm:$0xff]
    %v94 = vld [vmem:[#allocation5 + $0x38] sm:$0xff]
    %v95 = vld [vmem:[%s1] sm:$0xff]
    %v96 = vld [vmem:[#allocation7] sm:$0xff]
    %v97 = vld [vmem:[#allocation7 + $0x8] sm:$0xff]
    %v98 = vld [vmem:[#allocation7 + $0x10] sm:$0xff]
    %v99 = vld [vmem:[#allocation7 + $0x18] sm:$0xff]
    %v100 = vld [vmem:[#allocation7 + $0x20] sm:$0xff]
    %v101 = vld [vmem:[#allocation7 + $0x28] sm:$0xff]
    %v102 = vld [vmem:[#allocation7 + $0x30] sm:$0xff]
    %v103 = vld [vmem:[#allocation7 + $0x38] sm:$0xff]
    %v104 = vld [vmem:[#allocation7 + $0x40] sm:$0xff]
    %v105 = vld [vmem:[#allocation7 + $0x48] sm:$0xff]
    %v106 = vld [vmem:[#allocation7 + $0x50] sm:$0xff]
    %v107 = vld [vmem:[#allocation7 + $0x58] sm:$0xff]
    %v108 = vld [vmem:[#allocation7 + $0x60] sm:$0xff]
    %v109 = vld [vmem:[#allocation7 + $0x68] sm:$0xff]
    %v110 = vld [vmem:[#allocation7 + $0x70] sm:$0xff]
    %v111 = vld [vmem:[#allocation7 + $0x78] sm:$0xff]
    %v112 = vld [vmem:[#allocation7 + $0x80] sm:$0xff]
    %v113 = vld [vmem:[#allocation7 + $0x88] sm:$0xff]
    %v114 = vld [vmem:[#allocation7 + $0x90] sm:$0xff]
    %v115 = vld [vmem:[#allocation7 + $0x98] sm:$0xff]
    %v116 = vld [vmem:[#allocation7 + $0xa0] sm:$0xff]
    %v117 = vld [vmem:[#allocation7 + $0xa8] sm:$0xff]
    %v118 = vld [vmem:[#allocation7 + $0xb0] sm:$0xff]
    %v119 = vld [vmem:[#allocation7 + $0xb8] sm:$0xff]
    %v120 = vld [vmem:[#allocation7 + $0xc0] sm:$0xff]
    %v121 = vld [vmem:[#allocation7 + $0xc8] sm:$0xff]
    %v122 = vld [vmem:[#allocation7 + $0xd0] sm:$0xff]
    %v123 = vld [vmem:[#allocation7 + $0xd8] sm:$0xff]
    %v124 = vld [vmem:[#allocation7 + $0xe0] sm:$0xff]
    %v125 = vld [vmem:[#allocation7 + $0xe8] sm:$0xff]
    %v126 = vld [vmem:[#allocation7 + $0xf0] sm:$0xff]
    %v127 = vld [vmem:[#allocation7 + $0xf8] sm:$0xff]
    %v128 = vld [vmem:[#allocation7 + $0x100] sm:$0xff]
    %v129 = vld [vmem:[#allocation7 + $0x108] sm:$0xff]
    %v130 = vld [vmem:[#allocation7 + $0x110] sm:$0xff]
    %v131 = vld [vmem:[#allocation7 + $0x118] sm:$0xff]
    %v132 = vld [vmem:[#allocation7 + $0x120] sm:$0xff]
    %v133 = vld [vmem:[#allocation7 + $0x128] sm:$0xff]
    %v134 = vld [vmem:[#allocation7 + $0x130] sm:$0xff]
    %v135 = vld [vmem:[#allocation7 + $0x138] sm:$0xff]
    %v136 = vld [vmem:[#allocation7 + $0x140] sm:$0xff]
    %v137 = vld [vmem:[#allocation7 + $0x148] sm:$0xff]
    %v138 = vld [vmem:[#allocation7 + $0x150] sm:$0xff]
    %v139 = vld [vmem:[#allocation7 + $0x158] sm:$0xff]
    %v140 = vld [vmem:[#allocation7 + $0x160] sm:$0xff]
    %v141 = vld [vmem:[#allocation7 + $0x168] sm:$0xff]
    %v142 = vld [vmem:[#allocation7 + $0x170] sm:$0xff]
    %v143 = vld [vmem:[#allocation7 + $0x178] sm:$0xff]
    %v144 = vld [vmem:[#allocation7 + $0x180] sm:$0xff]
    %v145 = vld [vmem:[#allocation7 + $0x188] sm:$0xff]
    %v146 = vld [vmem:[#allocation7 + $0x190] sm:$0xff]
    %v147 = vld [vmem:[#allocation7 + $0x198] sm:$0xff]
    %v148 = vld [vmem:[#allocation7 + $0x1a0] sm:$0xff]
    %v149 = vld [vmem:[#allocation7 + $0x1a8] sm:$0xff]
    %v150 = vld [vmem:[#allocation7 + $0x1b0] sm:$0xff]
    %v151 = vld [vmem:[#allocation7 + $0x1b8] sm:$0xff]
    %v152 = vld [vmem:[#allocation7 + $0x1c0] sm:$0xff]
    %v153 = vld [vmem:[#allocation7 + $0x1c8] sm:$0xff]
    %v154 = vld [vmem:[#allocation7 + $0x1d0] sm:$0xff]
    %v155 = vld [vmem:[#allocation7 + $0x1d8] sm:$0xff]
    %v156 = vld [vmem:[#allocation7 + $0x1e0] sm:$0xff]
    %v157 = vld [vmem:[#allocation7 + $0x1e8] sm:$0xff]
    %v158 = vld [vmem:[#allocation7 + $0x1f0] sm:$0xff]
    %v159 = vld [vmem:[#allocation7 + $0x1f8] sm:$0xff]
    %160 = vmatpush.msra.mxu0 %v156
    %161 = vmatpush.msra.mxu0 %v152
    %162 = vmatpush.msra.mxu0 %v148
    %163 = vmatpush.msra.mxu0 %v144
    %164 = vmatpush.msra.mxu0 %v140
    %165 = vmatpush.msra.mxu0 %v136
    %166 = vmatpush.msra.mxu0 %v132
    %167 = vmatpush.msra.mxu0 %v128
    %168 = vmatpush.msra.mxu0 %v124
    %169 = vmatpush.msra.mxu0 %v120
    %170 = vmatpush.msra.mxu0 %v116
    %171 = vmatpush.msra.mxu0 %v112
    %172 = vmatpush.msra.mxu0 %v108
    %173 = vmatpush.msra.mxu0 %v104
    %174 = vmatpush.msra.mxu0 %v100
    %175 = vmatpush.msra.mxu0 %v96
    %176 = vmatmul.f32.gmra.mxu0 %v95
    %v177 = vpop.f32.mrf.mxu0
    %v178 = vadd.f32 0.0, %v177
    %179 = vdwg.mxu0
    %180 = vmatpush.msra.mxu0 %v157
    %181 = vmatpush.msra.mxu0 %v153
    %182 = vmatpush.msra.mxu0 %v149
    %183 = vmatpush.msra.mxu0 %v145
    %184 = vmatpush.msra.mxu0 %v141
    %185 = vmatpush.msra.mxu0 %v137
    %186 = vmatpush.msra.mxu0 %v133
    %187 = vmatpush.msra.mxu0 %v129
    %188 = vmatpush.msra.mxu0 %v125
    %189 = vmatpush.msra.mxu0 %v121
    %190 = vmatpush.msra.mxu0 %v117
    %191 = vmatpush.msra.mxu0 %v113
    %192 = vmatpush.msra.mxu0 %v109
    %193 = vmatpush.msra.mxu0 %v105
    %194 = vmatpush.msra.mxu0 %v101
    %195 = vmatpush.msra.mxu0 %v97
    %196 = vmatmul.f32.gmra.mxu0 %v95
    %v197 = vpop.f32.mrf.mxu0
    %v198 = vadd.f32 0.0, %v197
    %199 = vdwg.mxu0
    %200 = vmatpush.msra.mxu0 %v158
    %201 = vmatpush.msra.mxu0 %v154
    %202 = vmatpush.msra.mxu0 %v150
    %203 = vmatpush.msra.mxu0 %v146
    %204 = vmatpush.msra.mxu0 %v142
    %205 = vmatpush.msra.mxu0 %v138
    %206 = vmatpush.msra.mxu0 %v134
    %207 = vmatpush.msra.mxu0 %v130
    %208 = vmatpush.msra.mxu0 %v126
    %209 = vmatpush.msra.mxu0 %v122
    %210 = vmatpush.msra.mxu0 %v118
    %211 = vmatpush.msra.mxu0 %v114
    %212 = vmatpush.msra.mxu0 %v110
    %213 = vmatpush.msra.mxu0 %v106
    %214 = vmatpush.msra.mxu0 %v102
    %215 = vmatpush.msra.mxu0 %v98
    %216 = vmatmul.f32.gmra.mxu0 %v95
    %v217 = vpop.f32.mrf.mxu0
    %v218 = vadd.f32 0.0, %v217
    %219 = vdwg.mxu0
    %220 = vmatpush.msra.mxu0 %v159
    %221 = vmatpush.msra.mxu0 %v155
    %222 = vmatpush.msra.mxu0 %v151
    %223 = vmatpush.msra.mxu0 %v147
    %224 = vmatpush.msra.mxu0 %v143
    %225 = vmatpush.msra.mxu0 %v139
    %226 = vmatpush.msra.mxu0 %v135
    %227 = vmatpush.msra.mxu0 %v131
    %228 = vmatpush.msra.mxu0 %v127
    %229 = vmatpush.msra.mxu0 %v123
    %230 = vmatpush.msra.mxu0 %v119
    %231 = vmatpush.msra.mxu0 %v115
    %232 = vmatpush.msra.mxu0 %v111
    %233 = vmatpush.msra.mxu0 %v107
    %234 = vmatpush.msra.mxu0 %v103
    %235 = vmatpush.msra.mxu0 %v99
    %236 = vmatmul.f32.gmra.mxu0 %v95
    %v237 = vpop.f32.mrf.mxu0
    %v238 = vadd.f32 0.0, %v237
    %239 = vdwg.mxu0
    %vm240 = vcmask 130048
    %v242 = vsel %vm240, %v86, 0
    %244 = vmatpush.msra.mxu0 0.0
    %245 = vmatpush.msra.mxu0 0.0
    %246 = vmatpush.msra.mxu0 0.0
    %247 = vmatpush.msra.mxu0 0.0
    %248 = vmatpush.msra.mxu0 0.0
    %249 = vmatpush.msra.mxu0 0.0
    %250 = vmatpush.msra.mxu0 0.0
    %251 = vmatpush.msra.mxu0 0.0
    %252 = vmatpush.msra.mxu0 0.0
    %253 = vmatpush.msra.mxu0 0.0
    %254 = vmatpush.msra.mxu0 0.0
    %255 = vmatpush.msra.mxu0 0.0
    %256 = vmatpush.msra.mxu0 0.0
    %257 = vmatpush.msra.mxu0 0.0
    %258 = vmatpush.msra.mxu0 %v91
    %259 = vmatpush.msra.mxu0 %v87
    %260 = vmatmul.f32.gmra.mxu0 %v242
    %v261 = vpop.f32.mrf.mxu0
    %v262 = vadd.f32 %v178, %v261
    %263 = vdwg.mxu0
    %264 = vmatpush.msra.mxu0 0.0
    %265 = vmatpush.msra.mxu0 0.0
    %266 = vmatpush.msra.mxu0 0.0
    %267 = vmatpush.msra.mxu0 0.0
    %268 = vmatpush.msra.mxu0 0.0
    %269 = vmatpush.msra.mxu0 0.0
    %270 = vmatpush.msra.mxu0 0.0
    %271 = vmatpush.msra.mxu0 0.0
    %272 = vmatpush.msra.mxu0 0.0
    %273 = vmatpush.msra.mxu0 0.0
    %274 = vmatpush.msra.mxu0 0.0
    %275 = vmatpush.msra.mxu0 0.0
    %276 = vmatpush.msra.mxu0 0.0
    %277 = vmatpush.msra.mxu0 0.0
    %278 = vmatpush.msra.mxu0 %v92
    %279 = vmatpush.msra.mxu0 %v88
    %280 = vmatmul.f32.gmra.mxu0 %v242
    %v281 = vpop.f32.mrf.mxu0
    %v282 = vadd.f32 %v198, %v281
    %283 = vdwg.mxu0
    %284 = vmatpush.msra.mxu0 0.0
    %285 = vmatpush.msra.mxu0 0.0
    %286 = vmatpush.msra.mxu0 0.0
    %287 = vmatpush.msra.mxu0 0.0
    %288 = vmatpush.msra.mxu0 0.0
    %289 = vmatpush.msra.mxu0 0.0
    %290 = vmatpush.msra.mxu0 0.0
    %291 = vmatpush.msra.mxu0 0.0
    %292 = vmatpush.msra.mxu0 0.0
    %293 = vmatpush.msra.mxu0 0.0
    %294 = vmatpush.msra.mxu0 0.0
    %295 = vmatpush.msra.mxu0 0.0
    %296 = vmatpush.msra.mxu0 0.0
    %297 = vmatpush.msra.mxu0 0.0
    %298 = vmatpush.msra.mxu0 %v93
    %299 = vmatpush.msra.mxu0 %v89
    %300 = vmatmul.f32.gmra.mxu0 %v242
    %v301 = vpop.f32.mrf.mxu0
    %v302 = vadd.f32 %v218, %v301
    %303 = vdwg.mxu0
    %304 = vmatpush.msra.mxu0 0.0
    %305 = vmatpush.msra.mxu0 0.0
    %306 = vmatpush.msra.mxu0 0.0
    %307 = vmatpush.msra.mxu0 0.0
    %308 = vmatpush.msra.mxu0 0.0
    %309 = vmatpush.msra.mxu0 0.0
    %310 = vmatpush.msra.mxu0 0.0
    %311 = vmatpush.msra.mxu0 0.0
    %312 = vmatpush.msra.mxu0 0.0
    %313 = vmatpush.msra.mxu0 0.0
    %314 = vmatpush.msra.mxu0 0.0
    %315 = vmatpush.msra.mxu0 0.0
    %316 = vmatpush.msra.mxu0 0.0
    %317 = vmatpush.msra.mxu0 0.0
    %318 = vmatpush.msra.mxu0 %v94
    %319 = vmatpush.msra.mxu0 %v90
    %320 = vmatmul.f32.gmra.mxu0 %v242
    %v321 = vpop.f32.mrf.mxu0
    %v322 = vadd.f32 %v238, %v321
    %323 = vdwg.mxu0
    %v324 = vld [vmem:[#allocation8] sm:$0xf]
    %v326 = vperm.slane %v324, 0
    %v327 = vperm.slane %v324, 1
    %v328 = vperm.slane %v324, 2
    %v329 = vperm.slane %v324, 3
    %v334 = vadd.f32 %v262, %v326
    %v335 = vadd.f32 %v282, %v327
    %v336 = vadd.f32 %v302, %v328
    %v337 = vadd.f32 %v322, %v329
    %v338 = vmul.f32 %v334, 0.5
    %v339 = vtanh.pop %v338
    %v340 = vmul.f32 %v339, 0.5
    %v341 = vadd.f32 %v340, 0.5
    %v342 = vmul.f32 %v335, 0.5
    %v343 = vtanh.pop %v342
    %v344 = vmul.f32 %v343, 0.5
    %v345 = vadd.f32 %v344, 0.5
    %v346 = vtanh.pop %v336
    %v347 = vmul.f32 %v337, 0.5
    %v348 = vtanh.pop %v347
    %v349 = vmul.f32 %v348, 0.5
    %v350 = vadd.f32 %v349, 0.5
    %v351 = vld [vmem:[#allocation2] sm:$0xff]
    %v352 = vmul.f32 %v351, %v345
    %v353 = vmul.f32 %v341, %v346
    %v354 = vadd.f32 %v352, %v353
    %v355 = vtanh.pop %v354
    %v356 = vmul.f32 %v350, %v355
    %357 = vst [vmem:[#allocation11] sm:$0xff] %v354
    %358 = vst [vmem:[#allocation10] sm:$0xff] %v356
    // Predicated region
    $region42: #{tpu_custom_call.1} parent=1 // pred_check
      _
    $region43: #{tpu_custom_call.1} parent=1 // pred_check_branch
      %360 = sbr.rel (0) target = $region45
    $region44: #{tpu_custom_call.1} parent=1 // pred_region
      %362 = vsyncadd [#allocation4], 0
      %s364 = sshll.u32 [#allocation10], 4
      %s365 = int_to_ptr.vmem [resolvable:$true] %s364
      %s366 = sshll.u32 %s6, 4
      %s367 = int_to_ptr.hbm [resolvable:$true] %s366
      %369 = dma.vmem_to_hbm [thread:$0]  %s365, 128, %s367, [#allocation4]
    $region45: #{tpu_custom_call.1} parent=1 // pred_fallthru
      _
    // Predicated region
    $region46: #{tpu_custom_call.1} parent=1 // pred_check
      _
    $region47: #{tpu_custom_call.1} parent=1 // pred_check_branch
      %371 = sbr.rel (0) target = $region49
    $region48: #{tpu_custom_call.1} parent=1 // pred_region
      %373 = vsyncadd [#allocation12], 0
      %s375 = sshll.u32 [#allocation11], 4
      %s376 = int_to_ptr.vmem [resolvable:$true] %s375
      %s377 = sshll.u32 %s7, 4
      %s378 = int_to_ptr.hbm [resolvable:$true] %s377
      %380 = dma.vmem_to_hbm [thread:$0]  %s376, 128, %s378, [#allocation12]
    $region49: #{tpu_custom_call.1} parent=1 // pred_fallthru
      _
    // Predicated region
    $region50: #{tpu_custom_call.1} parent=1 // pred_check
      _
    $region51: #{tpu_custom_call.1} parent=1 // pred_check_branch
      %382 = sbr.rel (0) target = $region53
    $region52: #{tpu_custom_call.1} parent=1 // pred_region
      %384 = dma.done [#allocation4], 128
    $region53: #{tpu_custom_call.1} parent=1 // pred_fallthru
      _
    // Predicated region
    $region54: #{tpu_custom_call.1} parent=1 // pred_check
      _
    $region55: #{tpu_custom_call.1} parent=1 // pred_check_branch
      %386 = sbr.rel (0) target = $region57
    $region56: #{tpu_custom_call.1} parent=1 // pred_region
      %388 = dma.done [#allocation12], 128
    $region57: #{tpu_custom_call.1} parent=1 // pred_fallthru
      _
    %389 = vsyncpa [#allocation3], 1
    %390 = vsyncpa [#allocation6], 1
    %391 = vsyncpa [#allocation9], 1
    %392 = vsyncpa [#allocation4], 1
    %393 = vsyncpa [#allocation12], 1

</llo_original>
